<compile_context>
chip_gen: v6e
topology: v6e:2x2x1
jax: 0.10.0
libtpu: 0.0.40
codegen_flags: <defaults>
</compile_context>

<pallas_src>
import jax
import jax.numpy as jnp
from jax.experimental import pallas as pl
from jax.experimental.pallas import tpu as pltpu


# ---------------------------------------------------------------------------
# Kernel 1: fused conditioning MLPs (runs once; tiny, MXU + VPU).
# ---------------------------------------------------------------------------
def cond_mlp_kernel(y_ref, w1_ref, b1_ref, w2_ref, b2_ref, gb_ref):
    # layer 1: gamma & beta branches fused into one matmul
    h = jnp.dot(y_ref[...], w1_ref[...],
                preferred_element_type=jnp.float32) + b1_ref[...]
    h = jnp.maximum(h, 0.0)                                   # ReLU
    # layer 2: block-diagonal (2C, 2C) matmul keeps branches independent
    gb_ref[...] = jnp.dot(h, w2_ref[...],
                          preferred_element_type=jnp.float32) + b2_ref[...]


# ---------------------------------------------------------------------------
# Kernel 2: streaming affine modulation (HBM-bandwidth bound).
# ---------------------------------------------------------------------------
def affine_stream_kernel(g_ref, b_ref, x_ref, o_ref):
    # g_ref/b_ref: (r_tile, 1) broadcast over the lane-dense spatial axis.
    o_ref[...] = g_ref[...] * x_ref[...] + b_ref[...]


def _pick_tile(n, unit, max_tile):
    """Largest multiple of `unit` that divides n and is <= max_tile, else n
    (full-dim blocks always satisfy the (8,128) constraint)."""
    best = None
    t = unit
    while t <= min(n, max_tile):
        if n % t == 0:
            best = t
        t += unit
    return best if best is not None else n


def affine_forward(x, y, params):
    """x: (B, C, H, W) float32, y: (B, cond_dim) float32."""
    B, C, H, W = x.shape
    HW = H * W
    (w1g, b1g, w2g, b2g, w1b, b1b, w2b, b2b) = params

    # --- fuse the two conditioning branches (tiny wrapper-side ops) ---
    w1 = jnp.concatenate([w1g, w1b], axis=1)          # (cond, 2C)
    b1 = jnp.concatenate([b1g, b1b], axis=1)          # (1, 2C)
    w2 = jnp.zeros((2 * C, 2 * C), jnp.float32)       # block-diagonal layer 2
    w2 = w2.at[:C, :C].set(w2g).at[C:, C:].set(w2b)
    b2 = jnp.concatenate([b2g, b2b], axis=1)          # (1, 2C)

    vmem = pl.BlockSpec(memory_space=pltpu.MemorySpace.VMEM)
    gb = pl.pallas_call(
        cond_mlp_kernel,
        out_shape=jax.ShapeDtypeStruct((B, 2 * C), jnp.float32),
        in_specs=[vmem] * 5,
        out_specs=vmem,
    )(y, w1, b1, w2, b2)

    # Per-(B*C) modulation scalars, shaped (rows, 1) so their block's last
    # two dims are (r_tile, 1) -> legal and no 1-wide lane stores to HBM.
    gamma = gb[:, :C].reshape(B * C, 1)
    beta = gb[:, C:].reshape(B * C, 1)

    x2 = x.reshape(B * C, HW)                         # lane-dense last dim

    # --- tile selection: lane axis multiple of 128 (or full), sublane axis
    # multiple of 8 (or full); keep per-tile footprint small enough that
    # 2 x (x_tile + out_tile) stays well under the 32 MiB scoped VMEM limit.
    hw_tile = _pick_tile(HW, 128, 2048)
    budget_bytes = 2 * 1024 * 1024                    # per x-tile budget
    max_rows = max(8, budget_bytes // (hw_tile * 4))
    r_tile = _pick_tile(B * C, 8, max_rows)

    grid = (B * C // r_tile, HW // hw_tile)

    out = pl.pallas_call(
        affine_stream_kernel,
        out_shape=jax.ShapeDtypeStruct((B * C, HW), jnp.float32),
        grid=grid,
        in_specs=[
            pl.BlockSpec((r_tile, 1), lambda r, s: (r, 0)),        # gamma
            pl.BlockSpec((r_tile, 1), lambda r, s: (r, 0)),        # beta
            pl.BlockSpec((r_tile, hw_tile), lambda r, s: (r, s)),  # x
        ],
        out_specs=pl.BlockSpec((r_tile, hw_tile), lambda r, s: (r, s)),
        compiler_params=pltpu.CompilerParams(
            dimension_semantics=("parallel", "parallel"),
            vmem_limit_bytes=32 * 1024 * 1024,
        ),
    )(gamma, beta, x2)

    return out.reshape(B, C, H, W)


def init_params(key, cond_dim, num_features, random_linear2=False):
    """Synthetic init matching the module's _initialize():
       linear1's random; linear2 gamma: W=0, b=1; linear2 beta: W=0, b=0.
       With random_linear2=True, linear2's are random (exercises full path)."""
    k1, k2, k3, k4, k5, k6 = jax.random.split(key, 6)
    w1g = jax.random.normal(k1, (cond_dim, num_features), jnp.float32) * 0.1
    b1g = jnp.zeros((1, num_features), jnp.float32)
    w1b = jax.random.normal(k2, (cond_dim, num_features), jnp.float32) * 0.1
    b1b = jnp.zeros((1, num_features), jnp.float32)
    if random_linear2:
        w2g = jax.random.normal(k3, (num_features, num_features), jnp.float32) * 0.1
        b2g = jax.random.normal(k4, (1, num_features), jnp.float32) * 0.1
        w2b = jax.random.normal(k5, (num_features, num_features), jnp.float32) * 0.1
        b2b = jax.random.normal(k6, (1, num_features), jnp.float32) * 0.1
    else:
        w2g = jnp.zeros((num_features, num_features), jnp.float32)
        b2g = jnp.ones((1, num_features), jnp.float32)
        w2b = jnp.zeros((num_features, num_features), jnp.float32)
        b2b = jnp.zeros((1, num_features), jnp.float32)
    return (w1g, b1g, w2g, b2g, w1b, b1b, w2b, b2b)


def affine_reference(x, y, params):
    """Pure-JAX reference (unfused) for correctness check."""
    (w1g, b1g, w2g, b2g, w1b, b1b, w2b, b2b) = params
    gamma = jnp.maximum(y @ w1g + b1g, 0.0) @ w2g + b2g
    beta = jnp.maximum(y @ w1b + b1b, 0.0) @ w2b + b2b
    return gamma[:, :, None, None] * x + beta[:, :, None, None]


if __name__ == "__main__":
    B, C, H, W = 2, 4, 16, 16   # x: NCHW, C == num_features
    cond_dim = 8

    key = jax.random.PRNGKey(0)
    kx, ky, kp, kq = jax.random.split(key, 4)

    x = jax.random.normal(kx, (B, C, H, W), jnp.float32)
    y = jax.random.normal(ky, (B, cond_dim), jnp.float32)

    # 1) module's deterministic init (gamma=1, beta=0 -> identity)
    params = init_params(kp, cond_dim, C, random_linear2=False)
    out = jax.block_until_ready(affine_forward(x, y, params))
    ref = affine_reference(x, y, params)
    assert out.shape == (B, C, H, W)
    assert jnp.allclose(out, ref, atol=1e-5, rtol=1e-5)

    # 2) fully random params (exercises MLP + modulation math non-trivially)
    params_r = init_params(kq, cond_dim, C, random_linear2=True)
    out_r = jax.block_until_ready(affine_forward(x, y, params_r))
    ref_r = affine_reference(x, y, params_r)
    assert jnp.allclose(out_r, ref_r, atol=1e-5, rtol=1e-5)

    print("KERNEL_OK")
</pallas_src>

<mosaic_0001>
module attributes {stable_mosaic.version = 11 : i64} {
  func.func @cond_mlp_kernel(%arg0: memref<2x8xf32, #tpu.memory_space<vmem>>, %arg1: memref<8x8xf32, #tpu.memory_space<vmem>>, %arg2: memref<1x8xf32, #tpu.memory_space<vmem>>, %arg3: memref<8x8xf32, #tpu.memory_space<vmem>>, %arg4: memref<1x8xf32, #tpu.memory_space<vmem>>, %arg5: memref<2x8xf32, #tpu.memory_space<vmem>>) attributes {dimension_semantics = [], scalar_prefetch = 0 : i64, scratch_operands = 0 : i64, tpu.core_type = #tpu.core_type<tc>} {
    %c0 = arith.constant 0 : index
    %c0_0 = arith.constant 0 : index
    %0 = vector.load %arg0[%c0, %c0_0] : memref<2x8xf32, #tpu.memory_space<vmem>>, vector<2x8xf32>
    %c0_1 = arith.constant 0 : index
    %c0_2 = arith.constant 0 : index
    %1 = vector.load %arg1[%c0_1, %c0_2] : memref<8x8xf32, #tpu.memory_space<vmem>>, vector<8x8xf32>
    %cst = arith.constant dense<0.000000e+00> : vector<2x8xf32>
    %2 = tpu.matmul %0, %1, %cst {dimension_numbers = #tpu.dot_dimension_numbers<[1], [0], [0], [1], [0, 0, 1, 1], [], []>} : vector<2x8xf32>, vector<8x8xf32>, vector<2x8xf32> -> vector<2x8xf32>
    %c0_3 = arith.constant 0 : index
    %c0_4 = arith.constant 0 : index
    %3 = vector.load %arg2[%c0_3, %c0_4] : memref<1x8xf32, #tpu.memory_space<vmem>>, vector<1x8xf32>
    %4 = vector.broadcast %3 : vector<1x8xf32> to vector<2x8xf32>
    %5 = arith.addf %2, %4 : vector<2x8xf32>
    %cst_5 = arith.constant 0.000000e+00 : f32
    %6 = vector.broadcast %cst_5 : f32 to vector<2x8xf32>
    %7 = arith.maximumf %5, %6 : vector<2x8xf32>
    %c0_6 = arith.constant 0 : index
    %c0_7 = arith.constant 0 : index
    %8 = vector.load %arg3[%c0_6, %c0_7] : memref<8x8xf32, #tpu.memory_space<vmem>>, vector<8x8xf32>
    %cst_8 = arith.constant dense<0.000000e+00> : vector<2x8xf32>
    %9 = tpu.matmul %7, %8, %cst_8 {dimension_numbers = #tpu.dot_dimension_numbers<[1], [0], [0], [1], [0, 0, 1, 1], [], []>} : vector<2x8xf32>, vector<8x8xf32>, vector<2x8xf32> -> vector<2x8xf32>
    %c0_9 = arith.constant 0 : index
    %c0_10 = arith.constant 0 : index
    %10 = vector.load %arg4[%c0_9, %c0_10] : memref<1x8xf32, #tpu.memory_space<vmem>>, vector<1x8xf32>
    %11 = vector.broadcast %10 : vector<1x8xf32> to vector<2x8xf32>
    %12 = arith.addf %9, %11 : vector<2x8xf32>
    %c0_11 = arith.constant 0 : index
    %c0_12 = arith.constant 0 : index
    %13 = vector.load %arg5[%c0_11, %c0_12] : memref<2x8xf32, #tpu.memory_space<vmem>>, vector<2x8xf32>
    tpu.vector_store %arg5[%c0_11, %c0_12], %12 {strides = array<i32>} : memref<2x8xf32, #tpu.memory_space<vmem>>, vector<2x8xf32>,
    return
  }
}

</mosaic_0001>

<llo_original>
// kernel: tpu_custom_call.1
$region0: #{tpu_custom_call.1}
  #allocation0 [shape = 'u32[]', space=smem, size = 0x4, offset = 0x4, fixed_abs, tag = 'smem constant byte address 0x4 - core index']
  #allocation1 [shape = 'u32[144,128]{1,0:T(1,128)}', space=vmem, size = 0x12000, scoped, tag = 'internal scratch']
  %s0 = inlined_call_operand.hbm [shape: f32[2,8], index: 0, kind: input, shape index: {}]
  %s1 = inlined_call_operand.hbm [shape: f32[8,8], index: 1, kind: input, shape index: {}]
  %s2 = inlined_call_operand.vmem [shape: f32[1,8], index: 2, kind: input, shape index: {}]
  %s3 = inlined_call_operand.hbm [shape: f32[8,8], index: 3, kind: input, shape index: {}]
  %s4 = inlined_call_operand.vmem [shape: f32[1,8], index: 4, kind: input, shape index: {}]
  %s5 = inlined_call_operand.hbm [shape: f32[2,8], index: 5, kind: output, shape index: {}]
  %s6 = sld [smem:[#allocation0]]
  $region42: #{tpu_custom_call.1} parent=0
    _
  %s8 = ssub.s32 1, %s6
  %s9 = scalar_select 0, %s8, %s6
  $region1: #{tpu_custom_call.1} parent=0
    #allocation2 [shape = 'u8[1024]{0}', space=vmem, size = 0x400, scoped, tag = 'input window, operand 0, single buffered']
    #allocation3 [shape = 's32[1]{0}', space=sflag, size = 0x4, scoped, tag = 'scoped memory for tpu_custom_call.1']
    #allocation4 [shape = 's32[1]{0}', space=sflag, size = 0x4, scoped, tag = 'scoped memory for tpu_custom_call.1']
    #allocation5 [shape = 'u8[4096]{0}', space=vmem, size = 0x1000, scoped, tag = 'input window, operand 1, single buffered']
    #allocation6 [shape = 's32[1]{0}', space=sflag, size = 0x4, scoped, tag = 'scoped memory for tpu_custom_call.1']
    #allocation7 [shape = 'u8[4096]{0}', space=vmem, size = 0x1000, scoped, tag = 'input window, operand 3, single buffered']
    #allocation8 [shape = 'u8[1024]{0}', space=vmem, size = 0x400, scoped, tag = 'output window, operand 0, single buffered']
    %10 = vsyncpa [#allocation3], 0
    %11 = vsyncpa [#allocation6], 0
    %12 = vsyncpa [#allocation4], 0
    // Predicated region
    $region2: #{tpu_custom_call.1} parent=1 // pred_check
      _
    $region3: #{tpu_custom_call.1} parent=1 // pred_check_branch
      %14 = sbr.rel (0) target = $region5
    $region4: #{tpu_custom_call.1} parent=1 // pred_region
      %s16 = ssub.s32 32, 32
      %17 = vsyncadd [#allocation3], %s16
      %s19 = sshll.u32 [#allocation2], 4
      %s20 = int_to_ptr.vmem [resolvable:$true] %s19
      %22 = dma.hbm_to_vmem [thread:$0]  %s0, 32, %s20, [#allocation3]
    $region5: #{tpu_custom_call.1} parent=1 // pred_fallthru
      _
    // Predicated region
    $region6: #{tpu_custom_call.1} parent=1 // pred_check
      _
    $region7: #{tpu_custom_call.1} parent=1 // pred_check_branch
      %24 = sbr.rel (0) target = $region9
    $region8: #{tpu_custom_call.1} parent=1 // pred_region
      %s26 = ssub.s32 128, 128
      %27 = vsyncadd [#allocation6], %s26
      %s29 = sshll.u32 [#allocation5], 4
      %s30 = int_to_ptr.vmem [resolvable:$true] %s29
      %32 = dma.hbm_to_vmem [thread:$0]  %s1, 128, %s30, [#allocation6]
    $region9: #{tpu_custom_call.1} parent=1 // pred_fallthru
      _
    // Predicated region
    $region10: #{tpu_custom_call.1} parent=1 // pred_check
      _
    $region11: #{tpu_custom_call.1} parent=1 // pred_check_branch
      %34 = sbr.rel (0) target = $region13
    $region12: #{tpu_custom_call.1} parent=1 // pred_region
      _
    $region13: #{tpu_custom_call.1} parent=1 // pred_fallthru
      _
    // Predicated region
    $region14: #{tpu_custom_call.1} parent=1 // pred_check
      _
    $region15: #{tpu_custom_call.1} parent=1 // pred_check_branch
      %36 = sbr.rel (0) target = $region17
    $region16: #{tpu_custom_call.1} parent=1 // pred_region
      %s38 = ssub.s32 128, 128
      %39 = vsyncadd [#allocation6], %s38
      %s41 = sshll.u32 [#allocation7], 4
      %s42 = int_to_ptr.vmem [resolvable:$true] %s41
      %44 = dma.hbm_to_vmem [thread:$0]  %s3, 128, %s42, [#allocation6]
    $region17: #{tpu_custom_call.1} parent=1 // pred_fallthru
      _
    // Predicated region
    $region18: #{tpu_custom_call.1} parent=1 // pred_check
      _
    $region19: #{tpu_custom_call.1} parent=1 // pred_check_branch
      %46 = sbr.rel (0) target = $region21
    $region20: #{tpu_custom_call.1} parent=1 // pred_region
      _
    $region21: #{tpu_custom_call.1} parent=1 // pred_fallthru
      _
    // Predicated region
    $region22: #{tpu_custom_call.1} parent=1 // pred_check
      _
    $region23: #{tpu_custom_call.1} parent=1 // pred_check_branch
      %48 = sbr.rel (0) target = $region25
    $region24: #{tpu_custom_call.1} parent=1 // pred_region
      %49 = dma.done [#allocation3], 32
    $region25: #{tpu_custom_call.1} parent=1 // pred_fallthru
      _
    // Predicated region
    $region26: #{tpu_custom_call.1} parent=1 // pred_check
      _
    $region27: #{tpu_custom_call.1} parent=1 // pred_check_branch
      %51 = sbr.rel (0) target = $region29
    $region28: #{tpu_custom_call.1} parent=1 // pred_region
      %52 = dma.done [#allocation6], 128
    $region29: #{tpu_custom_call.1} parent=1 // pred_fallthru
      _
    // Predicated region
    $region30: #{tpu_custom_call.1} parent=1 // pred_check
      _
    $region31: #{tpu_custom_call.1} parent=1 // pred_check_branch
      %54 = sbr.rel (0) target = $region33
    $region32: #{tpu_custom_call.1} parent=1 // pred_region
      %55 = dma.done [#allocation6], 128
    $region33: #{tpu_custom_call.1} parent=1 // pred_fallthru
      _
    %v56 = vld [vmem:[#allocation2] sm:$0x3]
    %v57 = vld [vmem:[#allocation5] sm:$0xff]
    %v58 = vld [vmem:[%s2] sm:$0x1]
    %v60 = vlaneseq
    %v61 = vshrl.u32 %v60, 7
    %v62 = vsub.s32 0, %v61
    %v63 = vrot.slane %v58, %v62
    %vm65 = vcmask 64512
    %v67 = vsel %vm65, %v56, 0
    %69 = vmatprep.subr.mxu0 0.0
    %70 = vmatpush1.msra.mxu0 0.0
    %71 = vmatprep.subr.mxu0 0.0
    %72 = vmatpush1.msra.mxu0 0.0
    %73 = vmatprep.subr.mxu0 0.0
    %74 = vmatpush1.msra.mxu0 0.0
    %75 = vmatprep.subr.mxu0 0.0
    %76 = vmatpush1.msra.mxu0 0.0
    %77 = vmatprep.subr.mxu0 0.0
    %78 = vmatpush1.msra.mxu0 0.0
    %79 = vmatprep.subr.mxu0 0.0
    %80 = vmatpush1.msra.mxu0 0.0
    %81 = vmatprep.subr.mxu0 0.0
    %82 = vmatpush1.msra.mxu0 0.0
    %83 = vmatprep.subr.mxu0 0.0
    %84 = vmatpush1.msra.mxu0 0.0
    %85 = vmatprep.subr.mxu0 0.0
    %86 = vmatpush1.msra.mxu0 0.0
    %87 = vmatprep.subr.mxu0 0.0
    %88 = vmatpush1.msra.mxu0 0.0
    %89 = vmatprep.subr.mxu0 0.0
    %90 = vmatpush1.msra.mxu0 0.0
    %91 = vmatprep.subr.mxu0 0.0
    %92 = vmatpush1.msra.mxu0 0.0
    %93 = vmatprep.subr.mxu0 0.0
    %94 = vmatpush1.msra.mxu0 0.0
    %95 = vmatprep.subr.mxu0 0.0
    %96 = vmatpush1.msra.mxu0 0.0
    %97 = vmatprep.subr.mxu0 0.0
    %98 = vmatpush1.msra.mxu0 0.0
    %99 = vmatprep.subr.mxu0 0.0
    %100 = vmatpush1.msra.mxu0 %v57
    %101 = vmatprep.subr.mxu0 0.0
    %102 = vmatpush2.msra.mxu0 0.0
    %103 = vmatprep.subr.mxu0 0.0
    %104 = vmatpush2.msra.mxu0 0.0
    %105 = vmatprep.subr.mxu0 0.0
    %106 = vmatpush2.msra.mxu0 0.0
    %107 = vmatprep.subr.mxu0 0.0
    %108 = vmatpush2.msra.mxu0 0.0
    %109 = vmatprep.subr.mxu0 0.0
    %110 = vmatpush2.msra.mxu0 0.0
    %111 = vmatprep.subr.mxu0 0.0
    %112 = vmatpush2.msra.mxu0 0.0
    %113 = vmatprep.subr.mxu0 0.0
    %114 = vmatpush2.msra.mxu0 0.0
    %115 = vmatprep.subr.mxu0 0.0
    %116 = vmatpush2.msra.mxu0 0.0
    %117 = vmatprep.subr.mxu0 0.0
    %118 = vmatpush2.msra.mxu0 0.0
    %119 = vmatprep.subr.mxu0 0.0
    %120 = vmatpush2.msra.mxu0 0.0
    %121 = vmatprep.subr.mxu0 0.0
    %122 = vmatpush2.msra.mxu0 0.0
    %123 = vmatprep.subr.mxu0 0.0
    %124 = vmatpush2.msra.mxu0 0.0
    %125 = vmatprep.subr.mxu0 0.0
    %126 = vmatpush2.msra.mxu0 0.0
    %127 = vmatprep.subr.mxu0 0.0
    %128 = vmatpush2.msra.mxu0 0.0
    %129 = vmatprep.subr.mxu0 0.0
    %130 = vmatpush2.msra.mxu0 0.0
    %131 = vmatprep.subr.mxu0 0.0
    %132 = vmatpush2.msra.mxu0 0.0
    %133 = vmatprep.mubr.f32.mxu0 0.0
    %134 = vmatmul.mubr.f32.gmra.mxu0 %v67
    %v135 = vpop.f32.mrf.mxu0
    %v136 = vadd.f32 %v63, %v135
    %v137 = vpop.f32.mrf.mxu0
    %138 = vdwg.mxu0
    %v139 = vmax.f32 %v136, 0.0
    %v140 = vld [vmem:[#allocation7] sm:$0xff]
    %v141 = vld [vmem:[%s4] sm:$0x1]
    %v143 = vlaneseq
    %v144 = vshrl.u32 %v143, 7
    %v145 = vsub.s32 0, %v144
    %v146 = vrot.slane %v141, %v145
    %v149 = vsel %vm65, %v139, 0
    %151 = vmatprep.subr.mxu0 0.0
    %152 = vmatpush1.msra.mxu0 0.0
    %153 = vmatprep.subr.mxu0 0.0
    %154 = vmatpush1.msra.mxu0 0.0
    %155 = vmatprep.subr.mxu0 0.0
    %156 = vmatpush1.msra.mxu0 0.0
    %157 = vmatprep.subr.mxu0 0.0
    %158 = vmatpush1.msra.mxu0 0.0
    %159 = vmatprep.subr.mxu0 0.0
    %160 = vmatpush1.msra.mxu0 0.0
    %161 = vmatprep.subr.mxu0 0.0
    %162 = vmatpush1.msra.mxu0 0.0
    %163 = vmatprep.subr.mxu0 0.0
    %164 = vmatpush1.msra.mxu0 0.0
    %165 = vmatprep.subr.mxu0 0.0
    %166 = vmatpush1.msra.mxu0 0.0
    %167 = vmatprep.subr.mxu0 0.0
    %168 = vmatpush1.msra.mxu0 0.0
    %169 = vmatprep.subr.mxu0 0.0
    %170 = vmatpush1.msra.mxu0 0.0
    %171 = vmatprep.subr.mxu0 0.0
    %172 = vmatpush1.msra.mxu0 0.0
    %173 = vmatprep.subr.mxu0 0.0
    %174 = vmatpush1.msra.mxu0 0.0
    %175 = vmatprep.subr.mxu0 0.0
    %176 = vmatpush1.msra.mxu0 0.0
    %177 = vmatprep.subr.mxu0 0.0
    %178 = vmatpush1.msra.mxu0 0.0
    %179 = vmatprep.subr.mxu0 0.0
    %180 = vmatpush1.msra.mxu0 0.0
    %181 = vmatprep.subr.mxu0 0.0
    %182 = vmatpush1.msra.mxu0 %v140
    %183 = vmatprep.subr.mxu0 0.0
    %184 = vmatpush2.msra.mxu0 0.0
    %185 = vmatprep.subr.mxu0 0.0
    %186 = vmatpush2.msra.mxu0 0.0
    %187 = vmatprep.subr.mxu0 0.0
    %188 = vmatpush2.msra.mxu0 0.0
    %189 = vmatprep.subr.mxu0 0.0
    %190 = vmatpush2.msra.mxu0 0.0
    %191 = vmatprep.subr.mxu0 0.0
    %192 = vmatpush2.msra.mxu0 0.0
    %193 = vmatprep.subr.mxu0 0.0
    %194 = vmatpush2.msra.mxu0 0.0
    %195 = vmatprep.subr.mxu0 0.0
    %196 = vmatpush2.msra.mxu0 0.0
    %197 = vmatprep.subr.mxu0 0.0
    %198 = vmatpush2.msra.mxu0 0.0
    %199 = vmatprep.subr.mxu0 0.0
    %200 = vmatpush2.msra.mxu0 0.0
    %201 = vmatprep.subr.mxu0 0.0
    %202 = vmatpush2.msra.mxu0 0.0
    %203 = vmatprep.subr.mxu0 0.0
    %204 = vmatpush2.msra.mxu0 0.0
    %205 = vmatprep.subr.mxu0 0.0
    %206 = vmatpush2.msra.mxu0 0.0
    %207 = vmatprep.subr.mxu0 0.0
    %208 = vmatpush2.msra.mxu0 0.0
    %209 = vmatprep.subr.mxu0 0.0
    %210 = vmatpush2.msra.mxu0 0.0
    %211 = vmatprep.subr.mxu0 0.0
    %212 = vmatpush2.msra.mxu0 0.0
    %213 = vmatprep.subr.mxu0 0.0
    %214 = vmatpush2.msra.mxu0 0.0
    %215 = vmatprep.mubr.f32.mxu0 0.0
    %216 = vmatmul.mubr.f32.gmra.mxu0 %v149
    %v217 = vpop.f32.mrf.mxu0
    %v218 = vadd.f32 %v146, %v217
    %v219 = vpop.f32.mrf.mxu0
    %220 = vdwg.mxu0
    %vm221 = vcmask 58368
    %222 = vst.msk [vmem:[#allocation8] sm:$0x3] %vm221, %v218
    // Predicated region
    $region34: #{tpu_custom_call.1} parent=1 // pred_check
      _
    $region35: #{tpu_custom_call.1} parent=1 // pred_check_branch
      %224 = sbr.rel (0) target = $region37
    $region36: #{tpu_custom_call.1} parent=1 // pred_region
      %s226 = ssub.s32 32, 32
      %227 = vsyncadd [#allocation4], %s226
      %s229 = sshll.u32 [#allocation8], 4
      %s230 = int_to_ptr.vmem [resolvable:$true] %s229
      %232 = dma.vmem_to_hbm [thread:$0]  %s230, 32, %s5, [#allocation4]
    $region37: #{tpu_custom_call.1} parent=1 // pred_fallthru
      _
    // Predicated region
    $region38: #{tpu_custom_call.1} parent=1 // pred_check
      _
    $region39: #{tpu_custom_call.1} parent=1 // pred_check_branch
      %234 = sbr.rel (0) target = $region41
    $region40: #{tpu_custom_call.1} parent=1 // pred_region
      %235 = dma.done [#allocation4], 32
    $region41: #{tpu_custom_call.1} parent=1 // pred_fallthru
      _
    %236 = vsyncpa [#allocation3], 1
    %237 = vsyncpa [#allocation6], 1
    %238 = vsyncpa [#allocation4], 1

</llo_original>
